<compile_context>
chip_gen: v7x
topology: tpu7x:2x2x1
jax: 0.10.0
libtpu: 0.0.40
codegen_flags: <defaults>
</compile_context>

<pallas_src>
import math
import functools

import numpy as np
import jax
import jax.numpy as jnp
from jax.experimental import pallas as pl
from jax.experimental.pallas import tpu as pltpu


def _round_up(a, b):
    return ((a + b - 1) // b) * b


def _posenc_kernel(x_ref, enc_ref, *, L, SR):
    # x_ref:   (D, BR, 128)      input block; per-coordinate slabs of points
    # enc_ref: (D*2L, BR, 128)   output block; row d*2L+2l = sin, +1 = cos
    D, BR, _ = x_ref.shape
    n_sub = BR // SR
    out_dt = enc_ref.dtype
    pi = np.float32(math.pi)

    for d in range(D):                          # static, tiny (D ~ 3)
        base = d * 2 * L

        @pl.loop(0, n_sub)                      # real loop -> bounded live set
        def _(r, d=d, base=base):
            row0 = pl.multiple_of(r * SR, SR)   # sublane-aligned sub-chunk
            rows = pl.ds(row0, SR)
            xd = x_ref[d, rows, :].astype(jnp.float32)   # (SR, 128) dense tile
            # Only two transcendental polynomials per coordinate:
            s = jnp.sin(pi * xd)
            c = jnp.cos(pi * xd)
            enc_ref[base + 0, rows, :] = s.astype(out_dt)
            enc_ref[base + 1, rows, :] = c.astype(out_dt)
            # Remaining octaves via the double-angle recurrence (VPU FMAs).
            for l in range(1, L):
                s, c = 2.0 * s * c, 1.0 - 2.0 * (s * s)
                enc_ref[base + 2 * l + 0, rows, :] = s.astype(out_dt)
                enc_ref[base + 2 * l + 1, rows, :] = c.astype(out_dt)


def position_encode(x, L, *, tile_rows=512, feature_major_out=False):
    """x: (..., input_dims) -> (..., input_dims * (1 + 2L)), dtype preserved.

    If feature_major_out=True, returns the transposed (d_out, N) result and
    skips the final layout change (for consumers that contract either side).
    """
    D = x.shape[-1]
    batch_shape = x.shape[:-1]
    if L <= 0:
        return x

    N = math.prod(batch_shape) if batch_shape else 1
    d_enc = D * 2 * L
    d_out = D + d_enc

    x2 = x.reshape(N, D)
    xt = x2.T                                   # (D, N); small transpose (D cols)

    # Point index split as (rows, 128): lane-dense, sublane-dense tiles.
    rows = pl.cdiv(N, 128)
    SR = min(64, _round_up(rows, 8))            # sub-chunk rows (reg-friendly)
    BR = _round_up(min(int(tile_rows), _round_up(rows, SR)), SR)
    rows_pad = _round_up(rows, BR)
    NP = rows_pad * 128

    xt_p = jnp.pad(xt, ((0, 0), (0, NP - N))) if NP != N else xt
    x3 = xt_p.reshape(D, rows_pad, 128)

    kernel = functools.partial(_posenc_kernel, L=L, SR=SR)

    enc3 = pl.pallas_call(
        kernel,
        out_shape=jax.ShapeDtypeStruct((d_enc, rows_pad, 128), x.dtype),
        grid_spec=pltpu.PrefetchScalarGridSpec(
            num_scalar_prefetch=0,
            grid=(rows_pad // BR,),
            in_specs=[pl.BlockSpec((D, BR, 128), lambda i: (0, i, 0))],
            out_specs=pl.BlockSpec((d_enc, BR, 128), lambda i: (0, i, 0)),
        ),
        compiler_params=pltpu.CompilerParams(
            dimension_semantics=("parallel",)),
    )(x3)

    enc2 = enc3.reshape(d_enc, NP)              # free (contiguous) reshape
    if NP != N:
        enc2 = enc2[:, :N]

    if feature_major_out:
        # Preferred fused-consumer path: no output transpose pass at all.
        return jnp.concatenate([xt, enc2], axis=0)          # (d_out, N)

    out = jnp.concatenate([x2, enc2.T], axis=-1)             # (N, d_out)
    return out.reshape(*batch_shape, d_out)


def _position_encode_ref(x, L):
    """Pure-JAX reference mirroring the PyTorch forward."""
    if L == 0:
        return x
    bands = 2.0 ** jnp.repeat(jnp.arange(L, dtype=jnp.float32), 2)
    x_scaled = x[..., None] * bands * jnp.float32(math.pi)   # (..., D, 2L)
    idx = jnp.arange(2 * L)
    enc = jnp.where((idx % 2) == 0, jnp.sin(x_scaled), jnp.cos(x_scaled))
    enc = enc.reshape(*x.shape[:-1], x.shape[-1] * 2 * L)
    return jnp.concatenate([x, enc], axis=-1)


if __name__ == "__main__":
    L = 4
    input_dims = 3
    key = jax.random.PRNGKey(0)
    x = jax.random.uniform(key, (2, 8, 16, input_dims), dtype=jnp.float32,
                           minval=-1.0, maxval=1.0)

    out = jax.block_until_ready(position_encode(x, L))
    ref = _position_encode_ref(x, L)

    d_out = input_dims * (1 + 2 * L)
    assert out.shape == (2, 8, 16, d_out), out.shape
    # 2e-5 tolerance: the double-angle recurrence drifts a few ulp per octave
    # (documented perf/accuracy tradeoff); still f32-trig quality at L=4.
    err = float(jnp.max(jnp.abs(out - ref)))
    assert jnp.allclose(out, ref, atol=2e-5, rtol=2e-5), err

    # Feature-major (no-transpose) path.
    out_fm = jax.block_until_ready(position_encode(x, L, feature_major_out=True))
    ref_fm = ref.reshape(-1, d_out).T
    assert out_fm.shape == (d_out, 2 * 8 * 16), out_fm.shape
    assert jnp.allclose(out_fm, ref_fm, atol=2e-5, rtol=2e-5)

    print("KERNEL_OK")
</pallas_src>

<mosaic_0001>
module attributes {stable_mosaic.version = 11 : i64} {
  func.func @_posenc_kernel(%arg0: i32, %arg1: memref<3x8x128xf32, #tpu.memory_space<vmem>>, %arg2: memref<24x8x128xf32, #tpu.memory_space<vmem>>) attributes {dimension_semantics = [#tpu.dimension_semantics<parallel>], iteration_bounds = array<i64: 1>, scalar_prefetch = 0 : i64, scratch_operands = 0 : i64, tpu.core_type = #tpu.core_type<tc>, window_params = [{transform_indices = @transform_0, window_bounds = array<i64: 3, 8, 128>}, {transform_indices = @transform_1, window_bounds = array<i64: 24, 8, 128>}]} {
    %c0_i32 = arith.constant 0 : i32
    %c1_i32 = arith.constant 1 : i32
    %0 = arith.muli %c0_i32, %c1_i32 : i32
    %c0_i32_0 = arith.constant 0 : i32
    %1 = arith.addi %c0_i32_0, %0 : i32
    %c8_i32 = arith.constant 8 : i32
    %2 = arith.muli %1, %c8_i32 : i32
    %3 = tpu.assume_multiple %2, 8 : i32
    %c0 = arith.constant 0 : index
    %4 = arith.index_cast %3 : i32 to index
    %c0_1 = arith.constant 0 : index
    %5 = vector.load %arg1[%c0, %4, %c0_1] : memref<3x8x128xf32, #tpu.memory_space<vmem>>, vector<1x8x128xf32>
    %6 = vector.shape_cast %5 : vector<1x8x128xf32> to vector<8x128xf32>
    %cst = arith.constant 3.14159274 : f32
    %7 = vector.broadcast %cst : f32 to vector<8x128xf32>
    %8 = arith.mulf %7, %6 : vector<8x128xf32>
    %9 = math.sin %8 : vector<8x128xf32>
    %cst_2 = arith.constant 3.14159274 : f32
    %10 = vector.broadcast %cst_2 : f32 to vector<8x128xf32>
    %11 = arith.mulf %10, %6 : vector<8x128xf32>
    %12 = math.cos %11 : vector<8x128xf32>
    %c0_3 = arith.constant 0 : index
    %13 = arith.index_cast %3 : i32 to index
    %c0_4 = arith.constant 0 : index
    %14 = vector.load %arg2[%c0_3, %13, %c0_4] : memref<24x8x128xf32, #tpu.memory_space<vmem>>, vector<1x8x128xf32>
    %15 = vector.shape_cast %14 : vector<1x8x128xf32> to vector<8x128xf32>
    %16 = vector.shape_cast %9 : vector<8x128xf32> to vector<1x8x128xf32>
    tpu.vector_store %arg2[%c0_3, %13, %c0_4], %16 {strides = array<i32>} : memref<24x8x128xf32, #tpu.memory_space<vmem>>, vector<1x8x128xf32>,
    %c1 = arith.constant 1 : index
    %17 = arith.index_cast %3 : i32 to index
    %c0_5 = arith.constant 0 : index
    %18 = vector.load %arg2[%c1, %17, %c0_5] : memref<24x8x128xf32, #tpu.memory_space<vmem>>, vector<1x8x128xf32>
    %19 = vector.shape_cast %18 : vector<1x8x128xf32> to vector<8x128xf32>
    %20 = vector.shape_cast %12 : vector<8x128xf32> to vector<1x8x128xf32>
    tpu.vector_store %arg2[%c1, %17, %c0_5], %20 {strides = array<i32>} : memref<24x8x128xf32, #tpu.memory_space<vmem>>, vector<1x8x128xf32>,
    %cst_6 = arith.constant 2.000000e+00 : f32
    %21 = vector.broadcast %cst_6 : f32 to vector<8x128xf32>
    %22 = arith.mulf %21, %9 : vector<8x128xf32>
    %23 = arith.mulf %22, %12 : vector<8x128xf32>
    %24 = arith.mulf %9, %9 : vector<8x128xf32>
    %cst_7 = arith.constant 2.000000e+00 : f32
    %25 = vector.broadcast %cst_7 : f32 to vector<8x128xf32>
    %26 = arith.mulf %25, %24 : vector<8x128xf32>
    %cst_8 = arith.constant 1.000000e+00 : f32
    %27 = vector.broadcast %cst_8 : f32 to vector<8x128xf32>
    %28 = arith.subf %27, %26 : vector<8x128xf32>
    %c2 = arith.constant 2 : index
    %29 = arith.index_cast %3 : i32 to index
    %c0_9 = arith.constant 0 : index
    %30 = vector.load %arg2[%c2, %29, %c0_9] : memref<24x8x128xf32, #tpu.memory_space<vmem>>, vector<1x8x128xf32>
    %31 = vector.shape_cast %30 : vector<1x8x128xf32> to vector<8x128xf32>
    %32 = vector.shape_cast %23 : vector<8x128xf32> to vector<1x8x128xf32>
    tpu.vector_store %arg2[%c2, %29, %c0_9], %32 {strides = array<i32>} : memref<24x8x128xf32, #tpu.memory_space<vmem>>, vector<1x8x128xf32>,
    %c3 = arith.constant 3 : index
    %33 = arith.index_cast %3 : i32 to index
    %c0_10 = arith.constant 0 : index
    %34 = vector.load %arg2[%c3, %33, %c0_10] : memref<24x8x128xf32, #tpu.memory_space<vmem>>, vector<1x8x128xf32>
    %35 = vector.shape_cast %34 : vector<1x8x128xf32> to vector<8x128xf32>
    %36 = vector.shape_cast %28 : vector<8x128xf32> to vector<1x8x128xf32>
    tpu.vector_store %arg2[%c3, %33, %c0_10], %36 {strides = array<i32>} : memref<24x8x128xf32, #tpu.memory_space<vmem>>, vector<1x8x128xf32>,
    %cst_11 = arith.constant 2.000000e+00 : f32
    %37 = vector.broadcast %cst_11 : f32 to vector<8x128xf32>
    %38 = arith.mulf %37, %23 : vector<8x128xf32>
    %39 = arith.mulf %38, %28 : vector<8x128xf32>
    %40 = arith.mulf %23, %23 : vector<8x128xf32>
    %cst_12 = arith.constant 2.000000e+00 : f32
    %41 = vector.broadcast %cst_12 : f32 to vector<8x128xf32>
    %42 = arith.mulf %41, %40 : vector<8x128xf32>
    %cst_13 = arith.constant 1.000000e+00 : f32
    %43 = vector.broadcast %cst_13 : f32 to vector<8x128xf32>
    %44 = arith.subf %43, %42 : vector<8x128xf32>
    %c4 = arith.constant 4 : index
    %45 = arith.index_cast %3 : i32 to index
    %c0_14 = arith.constant 0 : index
    %46 = vector.load %arg2[%c4, %45, %c0_14] : memref<24x8x128xf32, #tpu.memory_space<vmem>>, vector<1x8x128xf32>
    %47 = vector.shape_cast %46 : vector<1x8x128xf32> to vector<8x128xf32>
    %48 = vector.shape_cast %39 : vector<8x128xf32> to vector<1x8x128xf32>
    tpu.vector_store %arg2[%c4, %45, %c0_14], %48 {strides = array<i32>} : memref<24x8x128xf32, #tpu.memory_space<vmem>>, vector<1x8x128xf32>,
    %c5 = arith.constant 5 : index
    %49 = arith.index_cast %3 : i32 to index
    %c0_15 = arith.constant 0 : index
    %50 = vector.load %arg2[%c5, %49, %c0_15] : memref<24x8x128xf32, #tpu.memory_space<vmem>>, vector<1x8x128xf32>
    %51 = vector.shape_cast %50 : vector<1x8x128xf32> to vector<8x128xf32>
    %52 = vector.shape_cast %44 : vector<8x128xf32> to vector<1x8x128xf32>
    tpu.vector_store %arg2[%c5, %49, %c0_15], %52 {strides = array<i32>} : memref<24x8x128xf32, #tpu.memory_space<vmem>>, vector<1x8x128xf32>,
    %cst_16 = arith.constant 2.000000e+00 : f32
    %53 = vector.broadcast %cst_16 : f32 to vector<8x128xf32>
    %54 = arith.mulf %53, %39 : vector<8x128xf32>
    %55 = arith.mulf %54, %44 : vector<8x128xf32>
    %56 = arith.mulf %39, %39 : vector<8x128xf32>
    %cst_17 = arith.constant 2.000000e+00 : f32
    %57 = vector.broadcast %cst_17 : f32 to vector<8x128xf32>
    %58 = arith.mulf %57, %56 : vector<8x128xf32>
    %cst_18 = arith.constant 1.000000e+00 : f32
    %59 = vector.broadcast %cst_18 : f32 to vector<8x128xf32>
    %60 = arith.subf %59, %58 : vector<8x128xf32>
    %c6 = arith.constant 6 : index
    %61 = arith.index_cast %3 : i32 to index
    %c0_19 = arith.constant 0 : index
    %62 = vector.load %arg2[%c6, %61, %c0_19] : memref<24x8x128xf32, #tpu.memory_space<vmem>>, vector<1x8x128xf32>
    %63 = vector.shape_cast %62 : vector<1x8x128xf32> to vector<8x128xf32>
    %64 = vector.shape_cast %55 : vector<8x128xf32> to vector<1x8x128xf32>
    tpu.vector_store %arg2[%c6, %61, %c0_19], %64 {strides = array<i32>} : memref<24x8x128xf32, #tpu.memory_space<vmem>>, vector<1x8x128xf32>,
    %c7 = arith.constant 7 : index
    %65 = arith.index_cast %3 : i32 to index
    %c0_20 = arith.constant 0 : index
    %66 = vector.load %arg2[%c7, %65, %c0_20] : memref<24x8x128xf32, #tpu.memory_space<vmem>>, vector<1x8x128xf32>
    %67 = vector.shape_cast %66 : vector<1x8x128xf32> to vector<8x128xf32>
    %68 = vector.shape_cast %60 : vector<8x128xf32> to vector<1x8x128xf32>
    tpu.vector_store %arg2[%c7, %65, %c0_20], %68 {strides = array<i32>} : memref<24x8x128xf32, #tpu.memory_space<vmem>>, vector<1x8x128xf32>,
    %c1_i32_21 = arith.constant 1 : i32
    %c0_i32_22 = arith.constant 0 : i32
    %c1_i32_23 = arith.constant 1 : i32
    %69 = arith.muli %c0_i32_22, %c1_i32_23 : i32
    %c0_i32_24 = arith.constant 0 : i32
    %70 = arith.addi %c0_i32_24, %69 : i32
    %c8_i32_25 = arith.constant 8 : i32
    %71 = arith.muli %70, %c8_i32_25 : i32
    %72 = tpu.assume_multiple %71, 8 : i32
    %c1_26 = arith.constant 1 : index
    %73 = arith.index_cast %72 : i32 to index
    %c0_27 = arith.constant 0 : index
    %74 = vector.load %arg1[%c1_26, %73, %c0_27] : memref<3x8x128xf32, #tpu.memory_space<vmem>>, vector<1x8x128xf32>
    %75 = vector.shape_cast %74 : vector<1x8x128xf32> to vector<8x128xf32>
    %cst_28 = arith.constant 3.14159274 : f32
    %76 = vector.broadcast %cst_28 : f32 to vector<8x128xf32>
    %77 = arith.mulf %76, %75 : vector<8x128xf32>
    %78 = math.sin %77 : vector<8x128xf32>
    %cst_29 = arith.constant 3.14159274 : f32
    %79 = vector.broadcast %cst_29 : f32 to vector<8x128xf32>
    %80 = arith.mulf %79, %75 : vector<8x128xf32>
    %81 = math.cos %80 : vector<8x128xf32>
    %c8 = arith.constant 8 : index
    %82 = arith.index_cast %72 : i32 to index
    %c0_30 = arith.constant 0 : index
    %83 = vector.load %arg2[%c8, %82, %c0_30] : memref<24x8x128xf32, #tpu.memory_space<vmem>>, vector<1x8x128xf32>
    %84 = vector.shape_cast %83 : vector<1x8x128xf32> to vector<8x128xf32>
    %85 = vector.shape_cast %78 : vector<8x128xf32> to vector<1x8x128xf32>
    tpu.vector_store %arg2[%c8, %82, %c0_30], %85 {strides = array<i32>} : memref<24x8x128xf32, #tpu.memory_space<vmem>>, vector<1x8x128xf32>,
    %c9 = arith.constant 9 : index
    %86 = arith.index_cast %72 : i32 to index
    %c0_31 = arith.constant 0 : index
    %87 = vector.load %arg2[%c9, %86, %c0_31] : memref<24x8x128xf32, #tpu.memory_space<vmem>>, vector<1x8x128xf32>
    %88 = vector.shape_cast %87 : vector<1x8x128xf32> to vector<8x128xf32>
    %89 = vector.shape_cast %81 : vector<8x128xf32> to vector<1x8x128xf32>
    tpu.vector_store %arg2[%c9, %86, %c0_31], %89 {strides = array<i32>} : memref<24x8x128xf32, #tpu.memory_space<vmem>>, vector<1x8x128xf32>,
    %cst_32 = arith.constant 2.000000e+00 : f32
    %90 = vector.broadcast %cst_32 : f32 to vector<8x128xf32>
    %91 = arith.mulf %90, %78 : vector<8x128xf32>
    %92 = arith.mulf %91, %81 : vector<8x128xf32>
    %93 = arith.mulf %78, %78 : vector<8x128xf32>
    %cst_33 = arith.constant 2.000000e+00 : f32
    %94 = vector.broadcast %cst_33 : f32 to vector<8x128xf32>
    %95 = arith.mulf %94, %93 : vector<8x128xf32>
    %cst_34 = arith.constant 1.000000e+00 : f32
    %96 = vector.broadcast %cst_34 : f32 to vector<8x128xf32>
    %97 = arith.subf %96, %95 : vector<8x128xf32>
    %c10 = arith.constant 10 : index
    %98 = arith.index_cast %72 : i32 to index
    %c0_35 = arith.constant 0 : index
    %99 = vector.load %arg2[%c10, %98, %c0_35] : memref<24x8x128xf32, #tpu.memory_space<vmem>>, vector<1x8x128xf32>
    %100 = vector.shape_cast %99 : vector<1x8x128xf32> to vector<8x128xf32>
    %101 = vector.shape_cast %92 : vector<8x128xf32> to vector<1x8x128xf32>
    tpu.vector_store %arg2[%c10, %98, %c0_35], %101 {strides = array<i32>} : memref<24x8x128xf32, #tpu.memory_space<vmem>>, vector<1x8x128xf32>,
    %c11 = arith.constant 11 : index
    %102 = arith.index_cast %72 : i32 to index
    %c0_36 = arith.constant 0 : index
    %103 = vector.load %arg2[%c11, %102, %c0_36] : memref<24x8x128xf32, #tpu.memory_space<vmem>>, vector<1x8x128xf32>
    %104 = vector.shape_cast %103 : vector<1x8x128xf32> to vector<8x128xf32>
    %105 = vector.shape_cast %97 : vector<8x128xf32> to vector<1x8x128xf32>
    tpu.vector_store %arg2[%c11, %102, %c0_36], %105 {strides = array<i32>} : memref<24x8x128xf32, #tpu.memory_space<vmem>>, vector<1x8x128xf32>,
    %cst_37 = arith.constant 2.000000e+00 : f32
    %106 = vector.broadcast %cst_37 : f32 to vector<8x128xf32>
    %107 = arith.mulf %106, %92 : vector<8x128xf32>
    %108 = arith.mulf %107, %97 : vector<8x128xf32>
    %109 = arith.mulf %92, %92 : vector<8x128xf32>
    %cst_38 = arith.constant 2.000000e+00 : f32
    %110 = vector.broadcast %cst_38 : f32 to vector<8x128xf32>
    %111 = arith.mulf %110, %109 : vector<8x128xf32>
    %cst_39 = arith.constant 1.000000e+00 : f32
    %112 = vector.broadcast %cst_39 : f32 to vector<8x128xf32>
    %113 = arith.subf %112, %111 : vector<8x128xf32>
    %c12 = arith.constant 12 : index
    %114 = arith.index_cast %72 : i32 to index
    %c0_40 = arith.constant 0 : index
    %115 = vector.load %arg2[%c12, %114, %c0_40] : memref<24x8x128xf32, #tpu.memory_space<vmem>>, vector<1x8x128xf32>
    %116 = vector.shape_cast %115 : vector<1x8x128xf32> to vector<8x128xf32>
    %117 = vector.shape_cast %108 : vector<8x128xf32> to vector<1x8x128xf32>
    tpu.vector_store %arg2[%c12, %114, %c0_40], %117 {strides = array<i32>} : memref<24x8x128xf32, #tpu.memory_space<vmem>>, vector<1x8x128xf32>,
    %c13 = arith.constant 13 : index
    %118 = arith.index_cast %72 : i32 to index
    %c0_41 = arith.constant 0 : index
    %119 = vector.load %arg2[%c13, %118, %c0_41] : memref<24x8x128xf32, #tpu.memory_space<vmem>>, vector<1x8x128xf32>
    %120 = vector.shape_cast %119 : vector<1x8x128xf32> to vector<8x128xf32>
    %121 = vector.shape_cast %113 : vector<8x128xf32> to vector<1x8x128xf32>
    tpu.vector_store %arg2[%c13, %118, %c0_41], %121 {strides = array<i32>} : memref<24x8x128xf32, #tpu.memory_space<vmem>>, vector<1x8x128xf32>,
    %cst_42 = arith.constant 2.000000e+00 : f32
    %122 = vector.broadcast %cst_42 : f32 to vector<8x128xf32>
    %123 = arith.mulf %122, %108 : vector<8x128xf32>
    %124 = arith.mulf %123, %113 : vector<8x128xf32>
    %125 = arith.mulf %108, %108 : vector<8x128xf32>
    %cst_43 = arith.constant 2.000000e+00 : f32
    %126 = vector.broadcast %cst_43 : f32 to vector<8x128xf32>
    %127 = arith.mulf %126, %125 : vector<8x128xf32>
    %cst_44 = arith.constant 1.000000e+00 : f32
    %128 = vector.broadcast %cst_44 : f32 to vector<8x128xf32>
    %129 = arith.subf %128, %127 : vector<8x128xf32>
    %c14 = arith.constant 14 : index
    %130 = arith.index_cast %72 : i32 to index
    %c0_45 = arith.constant 0 : index
    %131 = vector.load %arg2[%c14, %130, %c0_45] : memref<24x8x128xf32, #tpu.memory_space<vmem>>, vector<1x8x128xf32>
    %132 = vector.shape_cast %131 : vector<1x8x128xf32> to vector<8x128xf32>
    %133 = vector.shape_cast %124 : vector<8x128xf32> to vector<1x8x128xf32>
    tpu.vector_store %arg2[%c14, %130, %c0_45], %133 {strides = array<i32>} : memref<24x8x128xf32, #tpu.memory_space<vmem>>, vector<1x8x128xf32>,
    %c15 = arith.constant 15 : index
    %134 = arith.index_cast %72 : i32 to index
    %c0_46 = arith.constant 0 : index
    %135 = vector.load %arg2[%c15, %134, %c0_46] : memref<24x8x128xf32, #tpu.memory_space<vmem>>, vector<1x8x128xf32>
    %136 = vector.shape_cast %135 : vector<1x8x128xf32> to vector<8x128xf32>
    %137 = vector.shape_cast %129 : vector<8x128xf32> to vector<1x8x128xf32>
    tpu.vector_store %arg2[%c15, %134, %c0_46], %137 {strides = array<i32>} : memref<24x8x128xf32, #tpu.memory_space<vmem>>, vector<1x8x128xf32>,
    %c1_i32_47 = arith.constant 1 : i32
    %c0_i32_48 = arith.constant 0 : i32
    %c1_i32_49 = arith.constant 1 : i32
    %138 = arith.muli %c0_i32_48, %c1_i32_49 : i32
    %c0_i32_50 = arith.constant 0 : i32
    %139 = arith.addi %c0_i32_50, %138 : i32
    %c8_i32_51 = arith.constant 8 : i32
    %140 = arith.muli %139, %c8_i32_51 : i32
    %141 = tpu.assume_multiple %140, 8 : i32
    %c2_52 = arith.constant 2 : index
    %142 = arith.index_cast %141 : i32 to index
    %c0_53 = arith.constant 0 : index
    %143 = vector.load %arg1[%c2_52, %142, %c0_53] : memref<3x8x128xf32, #tpu.memory_space<vmem>>, vector<1x8x128xf32>
    %144 = vector.shape_cast %143 : vector<1x8x128xf32> to vector<8x128xf32>
    %cst_54 = arith.constant 3.14159274 : f32
    %145 = vector.broadcast %cst_54 : f32 to vector<8x128xf32>
    %146 = arith.mulf %145, %144 : vector<8x128xf32>
    %147 = math.sin %146 : vector<8x128xf32>
    %cst_55 = arith.constant 3.14159274 : f32
    %148 = vector.broadcast %cst_55 : f32 to vector<8x128xf32>
    %149 = arith.mulf %148, %144 : vector<8x128xf32>
    %150 = math.cos %149 : vector<8x128xf32>
    %c16 = arith.constant 16 : index
    %151 = arith.index_cast %141 : i32 to index
    %c0_56 = arith.constant 0 : index
    %152 = vector.load %arg2[%c16, %151, %c0_56] : memref<24x8x128xf32, #tpu.memory_space<vmem>>, vector<1x8x128xf32>
    %153 = vector.shape_cast %152 : vector<1x8x128xf32> to vector<8x128xf32>
    %154 = vector.shape_cast %147 : vector<8x128xf32> to vector<1x8x128xf32>
    tpu.vector_store %arg2[%c16, %151, %c0_56], %154 {strides = array<i32>} : memref<24x8x128xf32, #tpu.memory_space<vmem>>, vector<1x8x128xf32>,
    %c17 = arith.constant 17 : index
    %155 = arith.index_cast %141 : i32 to index
    %c0_57 = arith.constant 0 : index
    %156 = vector.load %arg2[%c17, %155, %c0_57] : memref<24x8x128xf32, #tpu.memory_space<vmem>>, vector<1x8x128xf32>
    %157 = vector.shape_cast %156 : vector<1x8x128xf32> to vector<8x128xf32>
    %158 = vector.shape_cast %150 : vector<8x128xf32> to vector<1x8x128xf32>
    tpu.vector_store %arg2[%c17, %155, %c0_57], %158 {strides = array<i32>} : memref<24x8x128xf32, #tpu.memory_space<vmem>>, vector<1x8x128xf32>,
    %cst_58 = arith.constant 2.000000e+00 : f32
    %159 = vector.broadcast %cst_58 : f32 to vector<8x128xf32>
    %160 = arith.mulf %159, %147 : vector<8x128xf32>
    %161 = arith.mulf %160, %150 : vector<8x128xf32>
    %162 = arith.mulf %147, %147 : vector<8x128xf32>
    %cst_59 = arith.constant 2.000000e+00 : f32
    %163 = vector.broadcast %cst_59 : f32 to vector<8x128xf32>
    %164 = arith.mulf %163, %162 : vector<8x128xf32>
    %cst_60 = arith.constant 1.000000e+00 : f32
    %165 = vector.broadcast %cst_60 : f32 to vector<8x128xf32>
    %166 = arith.subf %165, %164 : vector<8x128xf32>
    %c18 = arith.constant 18 : index
    %167 = arith.index_cast %141 : i32 to index
    %c0_61 = arith.constant 0 : index
    %168 = vector.load %arg2[%c18, %167, %c0_61] : memref<24x8x128xf32, #tpu.memory_space<vmem>>, vector<1x8x128xf32>
    %169 = vector.shape_cast %168 : vector<1x8x128xf32> to vector<8x128xf32>
    %170 = vector.shape_cast %161 : vector<8x128xf32> to vector<1x8x128xf32>
    tpu.vector_store %arg2[%c18, %167, %c0_61], %170 {strides = array<i32>} : memref<24x8x128xf32, #tpu.memory_space<vmem>>, vector<1x8x128xf32>,
    %c19 = arith.constant 19 : index
    %171 = arith.index_cast %141 : i32 to index
    %c0_62 = arith.constant 0 : index
    %172 = vector.load %arg2[%c19, %171, %c0_62] : memref<24x8x128xf32, #tpu.memory_space<vmem>>, vector<1x8x128xf32>
    %173 = vector.shape_cast %172 : vector<1x8x128xf32> to vector<8x128xf32>
    %174 = vector.shape_cast %166 : vector<8x128xf32> to vector<1x8x128xf32>
    tpu.vector_store %arg2[%c19, %171, %c0_62], %174 {strides = array<i32>} : memref<24x8x128xf32, #tpu.memory_space<vmem>>, vector<1x8x128xf32>,
    %cst_63 = arith.constant 2.000000e+00 : f32
    %175 = vector.broadcast %cst_63 : f32 to vector<8x128xf32>
    %176 = arith.mulf %175, %161 : vector<8x128xf32>
    %177 = arith.mulf %176, %166 : vector<8x128xf32>
    %178 = arith.mulf %161, %161 : vector<8x128xf32>
    %cst_64 = arith.constant 2.000000e+00 : f32
    %179 = vector.broadcast %cst_64 : f32 to vector<8x128xf32>
    %180 = arith.mulf %179, %178 : vector<8x128xf32>
    %cst_65 = arith.constant 1.000000e+00 : f32
    %181 = vector.broadcast %cst_65 : f32 to vector<8x128xf32>
    %182 = arith.subf %181, %180 : vector<8x128xf32>
    %c20 = arith.constant 20 : index
    %183 = arith.index_cast %141 : i32 to index
    %c0_66 = arith.constant 0 : index
    %184 = vector.load %arg2[%c20, %183, %c0_66] : memref<24x8x128xf32, #tpu.memory_space<vmem>>, vector<1x8x128xf32>
    %185 = vector.shape_cast %184 : vector<1x8x128xf32> to vector<8x128xf32>
    %186 = vector.shape_cast %177 : vector<8x128xf32> to vector<1x8x128xf32>
    tpu.vector_store %arg2[%c20, %183, %c0_66], %186 {strides = array<i32>} : memref<24x8x128xf32, #tpu.memory_space<vmem>>, vector<1x8x128xf32>,
    %c21 = arith.constant 21 : index
    %187 = arith.index_cast %141 : i32 to index
    %c0_67 = arith.constant 0 : index
    %188 = vector.load %arg2[%c21, %187, %c0_67] : memref<24x8x128xf32, #tpu.memory_space<vmem>>, vector<1x8x128xf32>
    %189 = vector.shape_cast %188 : vector<1x8x128xf32> to vector<8x128xf32>
    %190 = vector.shape_cast %182 : vector<8x128xf32> to vector<1x8x128xf32>
    tpu.vector_store %arg2[%c21, %187, %c0_67], %190 {strides = array<i32>} : memref<24x8x128xf32, #tpu.memory_space<vmem>>, vector<1x8x128xf32>,
    %cst_68 = arith.constant 2.000000e+00 : f32
    %191 = vector.broadcast %cst_68 : f32 to vector<8x128xf32>
    %192 = arith.mulf %191, %177 : vector<8x128xf32>
    %193 = arith.mulf %192, %182 : vector<8x128xf32>
    %194 = arith.mulf %177, %177 : vector<8x128xf32>
    %cst_69 = arith.constant 2.000000e+00 : f32
    %195 = vector.broadcast %cst_69 : f32 to vector<8x128xf32>
    %196 = arith.mulf %195, %194 : vector<8x128xf32>
    %cst_70 = arith.constant 1.000000e+00 : f32
    %197 = vector.broadcast %cst_70 : f32 to vector<8x128xf32>
    %198 = arith.subf %197, %196 : vector<8x128xf32>
    %c22 = arith.constant 22 : index
    %199 = arith.index_cast %141 : i32 to index
    %c0_71 = arith.constant 0 : index
    %200 = vector.load %arg2[%c22, %199, %c0_71] : memref<24x8x128xf32, #tpu.memory_space<vmem>>, vector<1x8x128xf32>
    %201 = vector.shape_cast %200 : vector<1x8x128xf32> to vector<8x128xf32>
    %202 = vector.shape_cast %193 : vector<8x128xf32> to vector<1x8x128xf32>
    tpu.vector_store %arg2[%c22, %199, %c0_71], %202 {strides = array<i32>} : memref<24x8x128xf32, #tpu.memory_space<vmem>>, vector<1x8x128xf32>,
    %c23 = arith.constant 23 : index
    %203 = arith.index_cast %141 : i32 to index
    %c0_72 = arith.constant 0 : index
    %204 = vector.load %arg2[%c23, %203, %c0_72] : memref<24x8x128xf32, #tpu.memory_space<vmem>>, vector<1x8x128xf32>
    %205 = vector.shape_cast %204 : vector<1x8x128xf32> to vector<8x128xf32>
    %206 = vector.shape_cast %198 : vector<8x128xf32> to vector<1x8x128xf32>
    tpu.vector_store %arg2[%c23, %203, %c0_72], %206 {strides = array<i32>} : memref<24x8x128xf32, #tpu.memory_space<vmem>>, vector<1x8x128xf32>,
    %c1_i32_73 = arith.constant 1 : i32
    return
  }
  func.func @transform_0(%arg0: i32) -> (i32, i32, i32) {
    %c0_i32 = arith.constant 0 : i32
    %c0_i32_0 = arith.constant 0 : i32
    %c0_i32_1 = arith.constant 0 : i32
    return %c0_i32, %arg0, %c0_i32_0 : i32, i32, i32
  }
  func.func @transform_1(%arg0: i32) -> (i32, i32, i32) {
    %c0_i32 = arith.constant 0 : i32
    %c0_i32_0 = arith.constant 0 : i32
    %c0_i32_1 = arith.constant 0 : i32
    return %c0_i32, %arg0, %c0_i32_0 : i32, i32, i32
  }
}

</mosaic_0001>

<llo_original>
// kernel: tpu_custom_call.1
$region0: #{tpu_custom_call.1}
  #allocation0 [shape = 'u32[]', space=smem, size = 0x4, offset = 0x4, fixed_abs, tag = 'smem constant byte address 0x4 - core index']
  #allocation1 [shape = 'u32[144,128]{1,0:T(1,128)}', space=vmem, size = 0x12000, scoped, tag = 'internal scratch']
  %s0 = inlined_call_operand.hbm [shape: f32[3,8,128], index: 0, kind: input, shape index: {}]
  %s1 = inlined_call_operand.hbm [shape: f32[24,8,128], index: 1, kind: output, shape index: {}]
  %s2 = sld [smem:[#allocation0]]
  $region18: #{tpu_custom_call.1} parent=0
    _
  %s4 = ssub.s32 1, %s2
  %s5 = scalar_select 0, %s4, %s2
  $region1: #{tpu_custom_call.1} parent=0
    #allocation2 [shape = 'u8[12288]{0}', space=vmem, size = 0x3000, scoped, tag = 'input window, operand 0, single buffered']
    #allocation3 [shape = 's32[1]{0}', space=sflag, size = 0x4, scoped, tag = 'scoped memory for tpu_custom_call.1']
    #allocation4 [shape = 's32[1]{0}', space=sflag, size = 0x4, scoped, tag = 'scoped memory for tpu_custom_call.1']
    #allocation5 [shape = 'u8[98304]{0}', space=vmem, size = 0x18000, scoped, tag = 'output window, operand 0, single buffered']
    %6 = vsyncpa [#allocation3], 0
    %7 = vsyncpa [#allocation4], 0
    // Predicated region
    $region2: #{tpu_custom_call.1} parent=1 // pred_check
      _
    $region3: #{tpu_custom_call.1} parent=1 // pred_check_branch
      %9 = sbr.rel (0) target = $region5
    $region4: #{tpu_custom_call.1} parent=1 // pred_region
      %s11 = ssub.s32 384, 384
      %12 = vsyncadd [#allocation3], %s11
      %s13 = sshll.u32 [#allocation2], 4
      %s14 = int_to_ptr.vmem [resolvable:$true] %s13
      %19 = dma.hbm_to_vmem [thread:$0]  %s0, 384, %s14, [#allocation3], 128, 128, 8
    $region5: #{tpu_custom_call.1} parent=1 // pred_fallthru
      _
    // Predicated region
    $region6: #{tpu_custom_call.1} parent=1 // pred_check
      _
    $region7: #{tpu_custom_call.1} parent=1 // pred_check_branch
      %21 = sbr.rel (0) target = $region9
    $region8: #{tpu_custom_call.1} parent=1 // pred_region
      %22 = dma.done [#allocation3], 384
    $region9: #{tpu_custom_call.1} parent=1 // pred_fallthru
      _
    %v23 = vld [vmem:[#allocation2] sm:$0xff]
    %v24 = vmul.f32 %v23, 3.1415927
    %v25 = vand.u32 2147483647, %v24
    %vm26 = vcmp.le.f32.partialorder %v25, 0.7853982
    %vm27 = vcmp.lt.s32.totalorder %v24, 0
    %v28 = vand.u32 %v24, 2139095040
    %v29 = vshrl.u32 %v28, 23
    %v30 = vsub.s32 %v29, 127
    %v31 = vand.u32 2147483647, %v24
    %v32 = vand.u32 %v31, 8388607
    %v33 = vor.u32 %v32, 8388608
    %v34 = vsub.s32 0, %v33
    %v35 = vadd.s32 %v30, 1
    %vm36 = vcmp.gt.s32.totalorder %v35, 0
    %v37 = vsel %vm36, %v35, 0
    %v38 = vshrl.u32 %v37, 5
    %v39 = vand.u32 %v37, 31
    %v40 = vsub.s32 32, %v39
    %v41 = vshrl.u32 683565275, %v40
    %v42 = vshll.u32 683565275, %v39
    %v43 = vshrl.u32 2475754826, %v40
    %v44 = vor.u32 %v42, %v43
    %v45 = vshll.u32 2475754826, %v39
    %v46 = vshrl.u32 2131351028, %v40
    %v47 = vor.u32 %v45, %v46
    %v48 = vshll.u32 2131351028, %v39
    %v49 = vshrl.u32 2102212464, %v40
    %v50 = vor.u32 %v48, %v49
    %v51 = vshll.u32 2102212464, %v39
    %v52 = vshrl.u32 920167782, %v40
    %v53 = vor.u32 %v51, %v52
    %v54 = vshll.u32 920167782, %v39
    %v55 = vshrl.u32 1326507024, %v40
    %v56 = vor.u32 %v54, %v55
    %vm57 = vcmp.lt.s32.totalorder %v38, 1
    %vm58 = vcmp.lt.s32.totalorder %v38, 2
    %vm59 = vcmp.lt.s32.totalorder %v38, 3
    %vm60 = vcmp.lt.s32.totalorder %v38, 4
    %v61 = vsel %vm57, %v41, %v44
    %v62 = vsel %vm60, %v50, 2102212464
    %v63 = vsel %vm59, %v47, %v62
    %v64 = vsel %vm58, %v61, %v63
    %v65 = vsel %vm57, %v44, %v47
    %v66 = vsel %vm60, %v53, 920167782
    %v67 = vsel %vm59, %v50, %v66
    %v68 = vsel %vm58, %v65, %v67
    %v69 = vsel %vm57, %v47, %v50
    %v70 = vsel %vm60, %v56, 1326507024
    %v71 = vsel %vm59, %v53, %v70
    %v72 = vsel %vm58, %v69, %v71
    %v73 = vshll.u32 %v33, 8
    %v74 = vmul.u32.u64.compose %v73, %v72
    %v75 = vextract.low.u32 %v74
    %v76 = vextract.high.u32 %v74
    %v77 = vmul.u32.u64.compose %v73, %v68
    %v78 = vextract.low.u32 %v77
    %v79 = vextract.high.u32 %v77
    %v80 = vmul.u32 %v73, %v64
    %v81 = vadd.s32 %v76, %v78
    %vm82 = vc.u32 %v76, %v78
    %v83 = vadd.s32 %v79, 1
    %v84 = vsel %vm82, %v83, %v79
    %v85 = vadd.s32 %v80, %v84
    %v86 = vadd.s32 %v85, 536870912
    %v87 = vshrl.u32 %v86, 30
    %v88 = vshll.u32 %v87, 30
    %v89 = vsub.s32 %v85, %v88
    %vm90 = vcmp.lt.s32.totalorder %v89, 0
    %v91 = vsub.s32 0, %v89
    %v92 = vsel %vm90, %v91, %v89
    %v93 = vclz %v92
    %v94 = vsub.s32 %v93, 2
    %vm95 = vcmp.gt.s32.totalorder 0, %v94
    %v96 = vsel %vm95, 0, %v94
    %v97 = vsub.s32 32, %v96
    %v98 = vshll.u32 %v89, %v96
    %v99 = vshrl.u32 %v81, %v97
    %v100 = vor.u32 %v98, %v99
    %v101 = vsub.s32 4294967266, %v96
    %v102 = vadd.s32 %v101, 127
    %v103 = vshll.u32 %v102, 23
    %v104 = vor.u32 4788187, %v103
    %v105 = vand.u32 2147483647, %v104
    %v107 = vcvt.s32.f32 %v100
    %v108 = vmul.f32 %v107, %v105
    %v109 = vxor.u32 %v108, 2147483648
    %v110 = vsel %vm27, %v109, %v108
    %v111 = vsub.s32 4, %v87
    %v112 = vsel %vm27, %v111, %v87
    %v113 = vsel %vm26, %v24, %v110
    %v114 = vsel %vm26, 0, %v112
    %v115 = vcosq.f32.pop %v113
    %v116 = vsinq.f32.pop %v113
    %vm117 = vweird.f32 %v24
    %v118 = vadd.s32 %v114, 3
    %v119 = vand.u32 %v118, 3
    %vm120 = vcmp.lt.s32.totalorder %v119, 2
    %vm121 = vcmp.eq.s32.totalorder %v119, 0
    %v122 = vxor.u32 %v116, 2147483648
    %v123 = vsel %vm121, %v115, %v122
    %vm124 = vcmp.eq.s32.totalorder %v119, 2
    %v125 = vxor.u32 %v115, 2147483648
    %v126 = vsel %vm124, %v125, %v116
    %v127 = vsel %vm120, %v123, %v126
    %v128 = vsel %vm117, nan, %v127
    %v129 = vand.u32 2147483647, %v24
    %vm130 = vcmp.le.f32.partialorder %v129, 0.7853982
    %vm131 = vcmp.lt.s32.totalorder %v24, 0
    %v132 = vand.u32 %v24, 2139095040
    %v133 = vshrl.u32 %v132, 23
    %v134 = vsub.s32 %v133, 127
    %v135 = vand.u32 2147483647, %v24
    %v136 = vand.u32 %v135, 8388607
    %v137 = vor.u32 %v136, 8388608
    %v138 = vsub.s32 0, %v137
    %v139 = vadd.s32 %v134, 1
    %vm140 = vcmp.gt.s32.totalorder %v139, 0
    %v141 = vsel %vm140, %v139, 0
    %v142 = vshrl.u32 %v141, 5
    %v143 = vand.u32 %v141, 31
    %v144 = vsub.s32 32, %v143
    %v145 = vshrl.u32 683565275, %v144
    %v146 = vshll.u32 683565275, %v143
    %v147 = vshrl.u32 2475754826, %v144
    %v148 = vor.u32 %v146, %v147
    %v149 = vshll.u32 2475754826, %v143
    %v150 = vshrl.u32 2131351028, %v144
    %v151 = vor.u32 %v149, %v150
    %v152 = vshll.u32 2131351028, %v143
    %v153 = vshrl.u32 2102212464, %v144
    %v154 = vor.u32 %v152, %v153
    %v155 = vshll.u32 2102212464, %v143
    %v156 = vshrl.u32 920167782, %v144
    %v157 = vor.u32 %v155, %v156
    %v158 = vshll.u32 920167782, %v143
    %v159 = vshrl.u32 1326507024, %v144
    %v160 = vor.u32 %v158, %v159
    %vm161 = vcmp.lt.s32.totalorder %v142, 1
    %vm162 = vcmp.lt.s32.totalorder %v142, 2
    %vm163 = vcmp.lt.s32.totalorder %v142, 3
    %vm164 = vcmp.lt.s32.totalorder %v142, 4
    %v165 = vsel %vm161, %v145, %v148
    %v166 = vsel %vm164, %v154, 2102212464
    %v167 = vsel %vm163, %v151, %v166
    %v168 = vsel %vm162, %v165, %v167
    %v169 = vsel %vm161, %v148, %v151
    %v170 = vsel %vm164, %v157, 920167782
    %v171 = vsel %vm163, %v154, %v170
    %v172 = vsel %vm162, %v169, %v171
    %v173 = vsel %vm161, %v151, %v154
    %v174 = vsel %vm164, %v160, 1326507024
    %v175 = vsel %vm163, %v157, %v174
    %v176 = vsel %vm162, %v173, %v175
    %v177 = vshll.u32 %v137, 8
    %v178 = vmul.u32.u64.compose %v177, %v176
    %v179 = vextract.low.u32 %v178
    %v180 = vextract.high.u32 %v178
    %v181 = vmul.u32.u64.compose %v177, %v172
    %v182 = vextract.low.u32 %v181
    %v183 = vextract.high.u32 %v181
    %v184 = vmul.u32 %v177, %v168
    %v185 = vadd.s32 %v180, %v182
    %vm186 = vc.u32 %v180, %v182
    %v187 = vadd.s32 %v183, 1
    %v188 = vsel %vm186, %v187, %v183
    %v189 = vadd.s32 %v184, %v188
    %v190 = vadd.s32 %v189, 536870912
    %v191 = vshrl.u32 %v190, 30
    %v192 = vshll.u32 %v191, 30
    %v193 = vsub.s32 %v189, %v192
    %vm194 = vcmp.lt.s32.totalorder %v193, 0
    %v195 = vsub.s32 0, %v193
    %v196 = vsel %vm194, %v195, %v193
    %v197 = vclz %v196
    %v198 = vsub.s32 %v197, 2
    %vm199 = vcmp.gt.s32.totalorder 0, %v198
    %v200 = vsel %vm199, 0, %v198
    %v201 = vsub.s32 32, %v200
    %v202 = vshll.u32 %v193, %v200
    %v203 = vshrl.u32 %v185, %v201
    %v204 = vor.u32 %v202, %v203
    %v205 = vsub.s32 4294967266, %v200
    %v206 = vadd.s32 %v205, 127
    %v207 = vshll.u32 %v206, 23
    %v208 = vor.u32 4788187, %v207
    %v209 = vand.u32 2147483647, %v208
    %v211 = vcvt.s32.f32 %v204
    %v212 = vmul.f32 %v211, %v209
    %v213 = vxor.u32 %v212, 2147483648
    %v214 = vsel %vm131, %v213, %v212
    %v215 = vsub.s32 4, %v191
    %v216 = vsel %vm131, %v215, %v191
    %v217 = vsel %vm130, %v24, %v214
    %v218 = vsel %vm130, 0, %v216
    %v219 = vcosq.f32.pop %v217
    %v220 = vsinq.f32.pop %v217
    %vm221 = vweird.f32 %v24
    %v222 = vand.u32 %v218, 3
    %vm223 = vcmp.lt.s32.totalorder %v222, 2
    %vm224 = vcmp.eq.s32.totalorder %v222, 0
    %v225 = vxor.u32 %v220, 2147483648
    %v226 = vsel %vm224, %v219, %v225
    %vm227 = vcmp.eq.s32.totalorder %v222, 2
    %v228 = vxor.u32 %v219, 2147483648
    %v229 = vsel %vm227, %v228, %v220
    %v230 = vsel %vm223, %v226, %v229
    %v231 = vsel %vm221, nan, %v230
    %232 = vst [vmem:[#allocation5] sm:$0xff] %v128
    %s233 = sadd.s32 0, 8
    %s234 = scalar_lea.vmem [#allocation5], %s233
    %235 = vst [vmem:[%s234] sm:$0xff] %v231
    %v236 = vmul.f32 %v128, 2.0
    %v237 = vmul.f32 %v236, %v231
    %v238 = vmul.f32 %v128, %v128
    %v239 = vmul.f32 %v238, 2.0
    %v240 = vsub.f32 1.0, %v239
    %s241 = sadd.s32 0, 16
    %s242 = scalar_lea.vmem [#allocation5], %s241
    %243 = vst [vmem:[%s242] sm:$0xff] %v237
    %s244 = sadd.s32 0, 24
    %s245 = scalar_lea.vmem [#allocation5], %s244
    %246 = vst [vmem:[%s245] sm:$0xff] %v240
    %v247 = vmul.f32 %v237, 2.0
    %v248 = vmul.f32 %v247, %v240
    %v249 = vmul.f32 %v237, %v237
    %v250 = vmul.f32 %v249, 2.0
    %v251 = vsub.f32 1.0, %v250
    %s252 = sadd.s32 0, 32
    %s253 = scalar_lea.vmem [#allocation5], %s252
    %254 = vst [vmem:[%s253] sm:$0xff] %v248
    %s255 = sadd.s32 0, 40
    %s256 = scalar_lea.vmem [#allocation5], %s255
    %257 = vst [vmem:[%s256] sm:$0xff] %v251
    %v258 = vmul.f32 %v248, 2.0
    %v259 = vmul.f32 %v258, %v251
    %v260 = vmul.f32 %v248, %v248
    %v261 = vmul.f32 %v260, 2.0
    %v262 = vsub.f32 1.0, %v261
    %s263 = sadd.s32 0, 48
    %s264 = scalar_lea.vmem [#allocation5], %s263
    %265 = vst [vmem:[%s264] sm:$0xff] %v259
    %s266 = sadd.s32 0, 56
    %s267 = scalar_lea.vmem [#allocation5], %s266
    %268 = vst [vmem:[%s267] sm:$0xff] %v262
    %s269 = scalar_lea.vmem [#allocation2], %s233
    %v270 = vld [vmem:[%s269] sm:$0xff]
    %v271 = vmul.f32 %v270, 3.1415927
    %v272 = vand.u32 2147483647, %v271
    %vm273 = vcmp.le.f32.partialorder %v272, 0.7853982
    %vm274 = vcmp.lt.s32.totalorder %v271, 0
    %v275 = vand.u32 %v271, 2139095040
    %v276 = vshrl.u32 %v275, 23
    %v277 = vsub.s32 %v276, 127
    %v278 = vand.u32 2147483647, %v271
    %v279 = vand.u32 %v278, 8388607
    %v280 = vor.u32 %v279, 8388608
    %v281 = vsub.s32 0, %v280
    %v282 = vadd.s32 %v277, 1
    %vm283 = vcmp.gt.s32.totalorder %v282, 0
    %v284 = vsel %vm283, %v282, 0
    %v285 = vshrl.u32 %v284, 5
    %v286 = vand.u32 %v284, 31
    %v287 = vsub.s32 32, %v286
    %v288 = vshrl.u32 683565275, %v287
    %v289 = vshll.u32 683565275, %v286
    %v290 = vshrl.u32 2475754826, %v287
    %v291 = vor.u32 %v289, %v290
    %v292 = vshll.u32 2475754826, %v286
    %v293 = vshrl.u32 2131351028, %v287
    %v294 = vor.u32 %v292, %v293
    %v295 = vshll.u32 2131351028, %v286
    %v296 = vshrl.u32 2102212464, %v287
    %v297 = vor.u32 %v295, %v296
    %v298 = vshll.u32 2102212464, %v286
    %v299 = vshrl.u32 920167782, %v287
    %v300 = vor.u32 %v298, %v299
    %v301 = vshll.u32 920167782, %v286
    %v302 = vshrl.u32 1326507024, %v287
    %v303 = vor.u32 %v301, %v302
    %vm304 = vcmp.lt.s32.totalorder %v285, 1
    %vm305 = vcmp.lt.s32.totalorder %v285, 2
    %vm306 = vcmp.lt.s32.totalorder %v285, 3
    %vm307 = vcmp.lt.s32.totalorder %v285, 4
    %v308 = vsel %vm304, %v288, %v291
    %v309 = vsel %vm307, %v297, 2102212464
    %v310 = vsel %vm306, %v294, %v309
    %v311 = vsel %vm305, %v308, %v310
    %v312 = vsel %vm304, %v291, %v294
    %v313 = vsel %vm307, %v300, 920167782
    %v314 = vsel %vm306, %v297, %v313
    %v315 = vsel %vm305, %v312, %v314
    %v316 = vsel %vm304, %v294, %v297
    %v317 = vsel %vm307, %v303, 1326507024
    %v318 = vsel %vm306, %v300, %v317
    %v319 = vsel %vm305, %v316, %v318
    %v320 = vshll.u32 %v280, 8
    %v321 = vmul.u32.u64.compose %v320, %v319
    %v322 = vextract.low.u32 %v321
    %v323 = vextract.high.u32 %v321
    %v324 = vmul.u32.u64.compose %v320, %v315
    %v325 = vextract.low.u32 %v324
    %v326 = vextract.high.u32 %v324
    %v327 = vmul.u32 %v320, %v311
    %v328 = vadd.s32 %v323, %v325
    %vm329 = vc.u32 %v323, %v325
    %v330 = vadd.s32 %v326, 1
    %v331 = vsel %vm329, %v330, %v326
    %v332 = vadd.s32 %v327, %v331
    %v333 = vadd.s32 %v332, 536870912
    %v334 = vshrl.u32 %v333, 30
    %v335 = vshll.u32 %v334, 30
    %v336 = vsub.s32 %v332, %v335
    %vm337 = vcmp.lt.s32.totalorder %v336, 0
    %v338 = vsub.s32 0, %v336
    %v339 = vsel %vm337, %v338, %v336
    %v340 = vclz %v339
    %v341 = vsub.s32 %v340, 2
    %vm342 = vcmp.gt.s32.totalorder 0, %v341
    %v343 = vsel %vm342, 0, %v341
    %v344 = vsub.s32 32, %v343
    %v345 = vshll.u32 %v336, %v343
    %v346 = vshrl.u32 %v328, %v344
    %v347 = vor.u32 %v345, %v346
    %v348 = vsub.s32 4294967266, %v343
    %v349 = vadd.s32 %v348, 127
    %v350 = vshll.u32 %v349, 23
    %v351 = vor.u32 4788187, %v350
    %v352 = vand.u32 2147483647, %v351
    %v354 = vcvt.s32.f32 %v347
    %v355 = vmul.f32 %v354, %v352
    %v356 = vxor.u32 %v355, 2147483648
    %v357 = vsel %vm274, %v356, %v355
    %v358 = vsub.s32 4, %v334
    %v359 = vsel %vm274, %v358, %v334
    %v360 = vsel %vm273, %v271, %v357
    %v361 = vsel %vm273, 0, %v359
    %v362 = vcosq.f32.pop %v360
    %v363 = vsinq.f32.pop %v360
    %vm364 = vweird.f32 %v271
    %v365 = vadd.s32 %v361, 3
    %v366 = vand.u32 %v365, 3
    %vm367 = vcmp.lt.s32.totalorder %v366, 2
    %vm368 = vcmp.eq.s32.totalorder %v366, 0
    %v369 = vxor.u32 %v363, 2147483648
    %v370 = vsel %vm368, %v362, %v369
    %vm371 = vcmp.eq.s32.totalorder %v366, 2
    %v372 = vxor.u32 %v362, 2147483648
    %v373 = vsel %vm371, %v372, %v363
    %v374 = vsel %vm367, %v370, %v373
    %v375 = vsel %vm364, nan, %v374
    %v376 = vand.u32 2147483647, %v271
    %vm377 = vcmp.le.f32.partialorder %v376, 0.7853982
    %vm378 = vcmp.lt.s32.totalorder %v271, 0
    %v379 = vand.u32 %v271, 2139095040
    %v380 = vshrl.u32 %v379, 23
    %v381 = vsub.s32 %v380, 127
    %v382 = vand.u32 2147483647, %v271
    %v383 = vand.u32 %v382, 8388607
    %v384 = vor.u32 %v383, 8388608
    %v385 = vsub.s32 0, %v384
    %v386 = vadd.s32 %v381, 1
    %vm387 = vcmp.gt.s32.totalorder %v386, 0
    %v388 = vsel %vm387, %v386, 0
    %v389 = vshrl.u32 %v388, 5
    %v390 = vand.u32 %v388, 31
    %v391 = vsub.s32 32, %v390
    %v392 = vshrl.u32 683565275, %v391
    %v393 = vshll.u32 683565275, %v390
    %v394 = vshrl.u32 2475754826, %v391
    %v395 = vor.u32 %v393, %v394
    %v396 = vshll.u32 2475754826, %v390
    %v397 = vshrl.u32 2131351028, %v391
    %v398 = vor.u32 %v396, %v397
    %v399 = vshll.u32 2131351028, %v390
    %v400 = vshrl.u32 2102212464, %v391
    %v401 = vor.u32 %v399, %v400
    %v402 = vshll.u32 2102212464, %v390
    %v403 = vshrl.u32 920167782, %v391
    %v404 = vor.u32 %v402, %v403
    %v405 = vshll.u32 920167782, %v390
    %v406 = vshrl.u32 1326507024, %v391
    %v407 = vor.u32 %v405, %v406
    %vm408 = vcmp.lt.s32.totalorder %v389, 1
    %vm409 = vcmp.lt.s32.totalorder %v389, 2
    %vm410 = vcmp.lt.s32.totalorder %v389, 3
    %vm411 = vcmp.lt.s32.totalorder %v389, 4
    %v412 = vsel %vm408, %v392, %v395
    %v413 = vsel %vm411, %v401, 2102212464
    %v414 = vsel %vm410, %v398, %v413
    %v415 = vsel %vm409, %v412, %v414
    %v416 = vsel %vm408, %v395, %v398
    %v417 = vsel %vm411, %v404, 920167782
    %v418 = vsel %vm410, %v401, %v417
    %v419 = vsel %vm409, %v416, %v418
    %v420 = vsel %vm408, %v398, %v401
    %v421 = vsel %vm411, %v407, 1326507024
    %v422 = vsel %vm410, %v404, %v421
    %v423 = vsel %vm409, %v420, %v422
    %v424 = vshll.u32 %v384, 8
    %v425 = vmul.u32.u64.compose %v424, %v423
    %v426 = vextract.low.u32 %v425
    %v427 = vextract.high.u32 %v425
    %v428 = vmul.u32.u64.compose %v424, %v419
    %v429 = vextract.low.u32 %v428
    %v430 = vextract.high.u32 %v428
    %v431 = vmul.u32 %v424, %v415
    %v432 = vadd.s32 %v427, %v429
    %vm433 = vc.u32 %v427, %v429
    %v434 = vadd.s32 %v430, 1
    %v435 = vsel %vm433, %v434, %v430
    %v436 = vadd.s32 %v431, %v435
    %v437 = vadd.s32 %v436, 536870912
    %v438 = vshrl.u32 %v437, 30
    %v439 = vshll.u32 %v438, 30
    %v440 = vsub.s32 %v436, %v439
    %vm441 = vcmp.lt.s32.totalorder %v440, 0
    %v442 = vsub.s32 0, %v440
    %v443 = vsel %vm441, %v442, %v440
    %v444 = vclz %v443
    %v445 = vsub.s32 %v444, 2
    %vm446 = vcmp.gt.s32.totalorder 0, %v445
    %v447 = vsel %vm446, 0, %v445
    %v448 = vsub.s32 32, %v447
    %v449 = vshll.u32 %v440, %v447
    %v450 = vshrl.u32 %v432, %v448
    %v451 = vor.u32 %v449, %v450
    %v452 = vsub.s32 4294967266, %v447
    %v453 = vadd.s32 %v452, 127
    %v454 = vshll.u32 %v453, 23
    %v455 = vor.u32 4788187, %v454
    %v456 = vand.u32 2147483647, %v455
    %v458 = vcvt.s32.f32 %v451
    %v459 = vmul.f32 %v458, %v456
    %v460 = vxor.u32 %v459, 2147483648
    %v461 = vsel %vm378, %v460, %v459
    %v462 = vsub.s32 4, %v438
    %v463 = vsel %vm378, %v462, %v438
    %v464 = vsel %vm377, %v271, %v461
    %v465 = vsel %vm377, 0, %v463
    %v466 = vcosq.f32.pop %v464
    %v467 = vsinq.f32.pop %v464
    %vm468 = vweird.f32 %v271
    %v469 = vand.u32 %v465, 3
    %vm470 = vcmp.lt.s32.totalorder %v469, 2
    %vm471 = vcmp.eq.s32.totalorder %v469, 0
    %v472 = vxor.u32 %v467, 2147483648
    %v473 = vsel %vm471, %v466, %v472
    %vm474 = vcmp.eq.s32.totalorder %v469, 2
    %v475 = vxor.u32 %v466, 2147483648
    %v476 = vsel %vm474, %v475, %v467
    %v477 = vsel %vm470, %v473, %v476
    %v478 = vsel %vm468, nan, %v477
    %s479 = sadd.s32 0, 64
    %s480 = scalar_lea.vmem [#allocation5], %s479
    %481 = vst [vmem:[%s480] sm:$0xff] %v375
    %s482 = sadd.s32 0, 72
    %s483 = scalar_lea.vmem [#allocation5], %s482
    %484 = vst [vmem:[%s483] sm:$0xff] %v478
    %v485 = vmul.f32 %v375, 2.0
    %v486 = vmul.f32 %v485, %v478
    %v487 = vmul.f32 %v375, %v375
    %v488 = vmul.f32 %v487, 2.0
    %v489 = vsub.f32 1.0, %v488
    %s490 = sadd.s32 0, 80
    %s491 = scalar_lea.vmem [#allocation5], %s490
    %492 = vst [vmem:[%s491] sm:$0xff] %v486
    %s493 = sadd.s32 0, 88
    %s494 = scalar_lea.vmem [#allocation5], %s493
    %495 = vst [vmem:[%s494] sm:$0xff] %v489
    %v496 = vmul.f32 %v486, 2.0
    %v497 = vmul.f32 %v496, %v489
    %v498 = vmul.f32 %v486, %v486
    %v499 = vmul.f32 %v498, 2.0
    %v500 = vsub.f32 1.0, %v499
    %s501 = sadd.s32 0, 96
    %s502 = scalar_lea.vmem [#allocation5], %s501
    %503 = vst [vmem:[%s502] sm:$0xff] %v497
    %s504 = sadd.s32 0, 104
    %s505 = scalar_lea.vmem [#allocation5], %s504
    %506 = vst [vmem:[%s505] sm:$0xff] %v500
    %v507 = vmul.f32 %v497, 2.0
    %v508 = vmul.f32 %v507, %v500
    %v509 = vmul.f32 %v497, %v497
    %v510 = vmul.f32 %v509, 2.0
    %v511 = vsub.f32 1.0, %v510
    %s512 = sadd.s32 0, 112
    %s513 = scalar_lea.vmem [#allocation5], %s512
    %514 = vst [vmem:[%s513] sm:$0xff] %v508
    %s515 = sadd.s32 0, 120
    %s516 = scalar_lea.vmem [#allocation5], %s515
    %517 = vst [vmem:[%s516] sm:$0xff] %v511
    %s518 = scalar_lea.vmem [#allocation2], %s241
    %v519 = vld [vmem:[%s518] sm:$0xff]
    %v520 = vmul.f32 %v519, 3.1415927
    %v521 = vand.u32 2147483647, %v520
    %vm522 = vcmp.le.f32.partialorder %v521, 0.7853982
    %vm523 = vcmp.lt.s32.totalorder %v520, 0
    %v524 = vand.u32 %v520, 2139095040
    %v525 = vshrl.u32 %v524, 23
    %v526 = vsub.s32 %v525, 127
    %v527 = vand.u32 2147483647, %v520
    %v528 = vand.u32 %v527, 8388607
    %v529 = vor.u32 %v528, 8388608
    %v530 = vsub.s32 0, %v529
    %v531 = vadd.s32 %v526, 1
    %vm532 = vcmp.gt.s32.totalorder %v531, 0
    %v533 = vsel %vm532, %v531, 0
    %v534 = vshrl.u32 %v533, 5
    %v535 = vand.u32 %v533, 31
    %v536 = vsub.s32 32, %v535
    %v537 = vshrl.u32 683565275, %v536
    %v538 = vshll.u32 683565275, %v535
    %v539 = vshrl.u32 2475754826, %v536
    %v540 = vor.u32 %v538, %v539
    %v541 = vshll.u32 2475754826, %v535
    %v542 = vshrl.u32 2131351028, %v536
    %v543 = vor.u32 %v541, %v542
    %v544 = vshll.u32 2131351028, %v535
    %v545 = vshrl.u32 2102212464, %v536
    %v546 = vor.u32 %v544, %v545
    %v547 = vshll.u32 2102212464, %v535
    %v548 = vshrl.u32 920167782, %v536
    %v549 = vor.u32 %v547, %v548
    %v550 = vshll.u32 920167782, %v535
    %v551 = vshrl.u32 1326507024, %v536
    %v552 = vor.u32 %v550, %v551
    %vm553 = vcmp.lt.s32.totalorder %v534, 1
    %vm554 = vcmp.lt.s32.totalorder %v534, 2
    %vm555 = vcmp.lt.s32.totalorder %v534, 3
    %vm556 = vcmp.lt.s32.totalorder %v534, 4
    %v557 = vsel %vm553, %v537, %v540
    %v558 = vsel %vm556, %v546, 2102212464
    %v559 = vsel %vm555, %v543, %v558
    %v560 = vsel %vm554, %v557, %v559
    %v561 = vsel %vm553, %v540, %v543
    %v562 = vsel %vm556, %v549, 920167782
    %v563 = vsel %vm555, %v546, %v562
    %v564 = vsel %vm554, %v561, %v563
    %v565 = vsel %vm553, %v543, %v546
    %v566 = vsel %vm556, %v552, 1326507024
    %v567 = vsel %vm555, %v549, %v566
    %v568 = vsel %vm554, %v565, %v567
    %v569 = vshll.u32 %v529, 8
    %v570 = vmul.u32.u64.compose %v569, %v568
    %v571 = vextract.low.u32 %v570
    %v572 = vextract.high.u32 %v570
    %v573 = vmul.u32.u64.compose %v569, %v564
    %v574 = vextract.low.u32 %v573
    %v575 = vextract.high.u32 %v573
    %v576 = vmul.u32 %v569, %v560
    %v577 = vadd.s32 %v572, %v574
    %vm578 = vc.u32 %v572, %v574
    %v579 = vadd.s32 %v575, 1
    %v580 = vsel %vm578, %v579, %v575
    %v581 = vadd.s32 %v576, %v580
    %v582 = vadd.s32 %v581, 536870912
    %v583 = vshrl.u32 %v582, 30
    %v584 = vshll.u32 %v583, 30
    %v585 = vsub.s32 %v581, %v584
    %vm586 = vcmp.lt.s32.totalorder %v585, 0
    %v587 = vsub.s32 0, %v585
    %v588 = vsel %vm586, %v587, %v585
    %v589 = vclz %v588
    %v590 = vsub.s32 %v589, 2
    %vm591 = vcmp.gt.s32.totalorder 0, %v590
    %v592 = vsel %vm591, 0, %v590
    %v593 = vsub.s32 32, %v592
    %v594 = vshll.u32 %v585, %v592
    %v595 = vshrl.u32 %v577, %v593
    %v596 = vor.u32 %v594, %v595
    %v597 = vsub.s32 4294967266, %v592
    %v598 = vadd.s32 %v597, 127
    %v599 = vshll.u32 %v598, 23
    %v600 = vor.u32 4788187, %v599
    %v601 = vand.u32 2147483647, %v600
    %v603 = vcvt.s32.f32 %v596
    %v604 = vmul.f32 %v603, %v601
    %v605 = vxor.u32 %v604, 2147483648
    %v606 = vsel %vm523, %v605, %v604
    %v607 = vsub.s32 4, %v583
    %v608 = vsel %vm523, %v607, %v583
    %v609 = vsel %vm522, %v520, %v606
    %v610 = vsel %vm522, 0, %v608
    %v611 = vcosq.f32.pop %v609
    %v612 = vsinq.f32.pop %v609
    %vm613 = vweird.f32 %v520
    %v614 = vadd.s32 %v610, 3
    %v615 = vand.u32 %v614, 3
    %vm616 = vcmp.lt.s32.totalorder %v615, 2
    %vm617 = vcmp.eq.s32.totalorder %v615, 0
    %v618 = vxor.u32 %v612, 2147483648
    %v619 = vsel %vm617, %v611, %v618
    %vm620 = vcmp.eq.s32.totalorder %v615, 2
    %v621 = vxor.u32 %v611, 2147483648
    %v622 = vsel %vm620, %v621, %v612
    %v623 = vsel %vm616, %v619, %v622
    %v624 = vsel %vm613, nan, %v623
    %v625 = vand.u32 2147483647, %v520
    %vm626 = vcmp.le.f32.partialorder %v625, 0.7853982
    %vm627 = vcmp.lt.s32.totalorder %v520, 0
    %v628 = vand.u32 %v520, 2139095040
    %v629 = vshrl.u32 %v628, 23
    %v630 = vsub.s32 %v629, 127
    %v631 = vand.u32 2147483647, %v520
    %v632 = vand.u32 %v631, 8388607
    %v633 = vor.u32 %v632, 8388608
    %v634 = vsub.s32 0, %v633
    %v635 = vadd.s32 %v630, 1
    %vm636 = vcmp.gt.s32.totalorder %v635, 0
    %v637 = vsel %vm636, %v635, 0
    %v638 = vshrl.u32 %v637, 5
    %v639 = vand.u32 %v637, 31
    %v640 = vsub.s32 32, %v639
    %v641 = vshrl.u32 683565275, %v640
    %v642 = vshll.u32 683565275, %v639
    %v643 = vshrl.u32 2475754826, %v640
    %v644 = vor.u32 %v642, %v643
    %v645 = vshll.u32 2475754826, %v639
    %v646 = vshrl.u32 2131351028, %v640
    %v647 = vor.u32 %v645, %v646
    %v648 = vshll.u32 2131351028, %v639
    %v649 = vshrl.u32 2102212464, %v640
    %v650 = vor.u32 %v648, %v649
    %v651 = vshll.u32 2102212464, %v639
    %v652 = vshrl.u32 920167782, %v640
    %v653 = vor.u32 %v651, %v652
    %v654 = vshll.u32 920167782, %v639
    %v655 = vshrl.u32 1326507024, %v640
    %v656 = vor.u32 %v654, %v655
    %vm657 = vcmp.lt.s32.totalorder %v638, 1
    %vm658 = vcmp.lt.s32.totalorder %v638, 2
    %vm659 = vcmp.lt.s32.totalorder %v638, 3
    %vm660 = vcmp.lt.s32.totalorder %v638, 4
    %v661 = vsel %vm657, %v641, %v644
    %v662 = vsel %vm660, %v650, 2102212464
    %v663 = vsel %vm659, %v647, %v662
    %v664 = vsel %vm658, %v661, %v663
    %v665 = vsel %vm657, %v644, %v647
    %v666 = vsel %vm660, %v653, 920167782
    %v667 = vsel %vm659, %v650, %v666
    %v668 = vsel %vm658, %v665, %v667
    %v669 = vsel %vm657, %v647, %v650
    %v670 = vsel %vm660, %v656, 1326507024
    %v671 = vsel %vm659, %v653, %v670
    %v672 = vsel %vm658, %v669, %v671
    %v673 = vshll.u32 %v633, 8
    %v674 = vmul.u32.u64.compose %v673, %v672
    %v675 = vextract.low.u32 %v674
    %v676 = vextract.high.u32 %v674
    %v677 = vmul.u32.u64.compose %v673, %v668
    %v678 = vextract.low.u32 %v677
    %v679 = vextract.high.u32 %v677
    %v680 = vmul.u32 %v673, %v664
    %v681 = vadd.s32 %v676, %v678
    %vm682 = vc.u32 %v676, %v678
    %v683 = vadd.s32 %v679, 1
    %v684 = vsel %vm682, %v683, %v679
    %v685 = vadd.s32 %v680, %v684
    %v686 = vadd.s32 %v685, 536870912
    %v687 = vshrl.u32 %v686, 30
    %v688 = vshll.u32 %v687, 30
    %v689 = vsub.s32 %v685, %v688
    %vm690 = vcmp.lt.s32.totalorder %v689, 0
    %v691 = vsub.s32 0, %v689
    %v692 = vsel %vm690, %v691, %v689
    %v693 = vclz %v692
    %v694 = vsub.s32 %v693, 2
    %vm695 = vcmp.gt.s32.totalorder 0, %v694
    %v696 = vsel %vm695, 0, %v694
    %v697 = vsub.s32 32, %v696
    %v698 = vshll.u32 %v689, %v696
    %v699 = vshrl.u32 %v681, %v697
    %v700 = vor.u32 %v698, %v699
    %v701 = vsub.s32 4294967266, %v696
    %v702 = vadd.s32 %v701, 127
    %v703 = vshll.u32 %v702, 23
    %v704 = vor.u32 4788187, %v703
    %v705 = vand.u32 2147483647, %v704
    %v707 = vcvt.s32.f32 %v700
    %v708 = vmul.f32 %v707, %v705
    %v709 = vxor.u32 %v708, 2147483648
    %v710 = vsel %vm627, %v709, %v708
    %v711 = vsub.s32 4, %v687
    %v712 = vsel %vm627, %v711, %v687
    %v713 = vsel %vm626, %v520, %v710
    %v714 = vsel %vm626, 0, %v712
    %v715 = vcosq.f32.pop %v713
    %v716 = vsinq.f32.pop %v713
    %vm717 = vweird.f32 %v520
    %v718 = vand.u32 %v714, 3
    %vm719 = vcmp.lt.s32.totalorder %v718, 2
    %vm720 = vcmp.eq.s32.totalorder %v718, 0
    %v721 = vxor.u32 %v716, 2147483648
    %v722 = vsel %vm720, %v715, %v721
    %vm723 = vcmp.eq.s32.totalorder %v718, 2
    %v724 = vxor.u32 %v715, 2147483648
    %v725 = vsel %vm723, %v724, %v716
    %v726 = vsel %vm719, %v722, %v725
    %v727 = vsel %vm717, nan, %v726
    %s728 = sadd.s32 0, 128
    %s729 = scalar_lea.vmem [#allocation5], %s728
    %730 = vst [vmem:[%s729] sm:$0xff] %v624
    %s731 = sadd.s32 0, 136
    %s732 = scalar_lea.vmem [#allocation5], %s731
    %733 = vst [vmem:[%s732] sm:$0xff] %v727
    %v734 = vmul.f32 %v624, 2.0
    %v735 = vmul.f32 %v734, %v727
    %v736 = vmul.f32 %v624, %v624
    %v737 = vmul.f32 %v736, 2.0
    %v738 = vsub.f32 1.0, %v737
    %s739 = sadd.s32 0, 144
    %s740 = scalar_lea.vmem [#allocation5], %s739
    %741 = vst [vmem:[%s740] sm:$0xff] %v735
    %s742 = sadd.s32 0, 152
    %s743 = scalar_lea.vmem [#allocation5], %s742
    %744 = vst [vmem:[%s743] sm:$0xff] %v738
    %v745 = vmul.f32 %v735, 2.0
    %v746 = vmul.f32 %v745, %v738
    %v747 = vmul.f32 %v735, %v735
    %v748 = vmul.f32 %v747, 2.0
    %v749 = vsub.f32 1.0, %v748
    %s750 = sadd.s32 0, 160
    %s751 = scalar_lea.vmem [#allocation5], %s750
    %752 = vst [vmem:[%s751] sm:$0xff] %v746
    %s753 = sadd.s32 0, 168
    %s754 = scalar_lea.vmem [#allocation5], %s753
    %755 = vst [vmem:[%s754] sm:$0xff] %v749
    %v756 = vmul.f32 %v746, 2.0
    %v757 = vmul.f32 %v756, %v749
    %v758 = vmul.f32 %v746, %v746
    %v759 = vmul.f32 %v758, 2.0
    %v760 = vsub.f32 1.0, %v759
    %s761 = sadd.s32 0, 176
    %s762 = scalar_lea.vmem [#allocation5], %s761
    %763 = vst [vmem:[%s762] sm:$0xff] %v757
    %s764 = sadd.s32 0, 184
    %s765 = scalar_lea.vmem [#allocation5], %s764
    %766 = vst [vmem:[%s765] sm:$0xff] %v760
    // Predicated region
    $region10: #{tpu_custom_call.1} parent=1 // pred_check
      _
    $region11: #{tpu_custom_call.1} parent=1 // pred_check_branch
      %768 = sbr.rel (0) target = $region13
    $region12: #{tpu_custom_call.1} parent=1 // pred_region
      %s770 = ssub.s32 3072, 3072
      %771 = vsyncadd [#allocation4], %s770
      %s772 = sshll.u32 [#allocation5], 4
      %s773 = int_to_ptr.vmem [resolvable:$true] %s772
      %778 = dma.vmem_to_hbm [thread:$0]  %s773, 3072, %s1, [#allocation4], 128, 128, 8
    $region13: #{tpu_custom_call.1} parent=1 // pred_fallthru
      _
    // Predicated region
    $region14: #{tpu_custom_call.1} parent=1 // pred_check
      _
    $region15: #{tpu_custom_call.1} parent=1 // pred_check_branch
      %780 = sbr.rel (0) target = $region17
    $region16: #{tpu_custom_call.1} parent=1 // pred_region
      %781 = dma.done [#allocation4], 3072
    $region17: #{tpu_custom_call.1} parent=1 // pred_fallthru
      _
    %782 = vsyncpa [#allocation3], 1
    %783 = vsyncpa [#allocation4], 1

</llo_original>
